<compile_context>
chip_gen: v5e
topology: v5e:2x2
jax: 0.10.0
libtpu: 0.0.40
codegen_flags: <defaults>
</compile_context>

<pallas_src>
import jax
import jax.numpy as jnp
from jax.experimental import pallas as pl
from jax.experimental.pallas import tpu as pltpu


_INV_SQRT2 = 0.7071067811865476


def _erf_f32(z):
    # Abramowitz & Stegun 7.1.26 rational approximation, |err| < 1.5e-7.
    # Divide moved to the EUP (approx reciprocal) + one Newton step on the VALU.
    a1, a2, a3, a4, a5 = (0.254829592, -0.284496736, 1.421413741,
                          -1.453152027, 1.061405429)
    p = 0.3275911
    az = jnp.abs(z)
    d = 1.0 + p * az
    t = pl.reciprocal(d, approx=True)     # EUP vrcp (free slot)
    t = t * (2.0 - d * t)                 # one NR step -> ~full f32 precision
    poly = ((((a5 * t + a4) * t + a3) * t + a2) * t + a1) * t
    e = 1.0 - poly * jnp.exp(-az * az)
    return jnp.where(z < 0.0, -e, e)


def _gelu_exact(x):
    # Exact (erf-based) GELU, matching PyTorch nn.GELU() default.
    return 0.5 * x * (1.0 + _erf_f32(x * _INV_SQRT2))


def _mlp_block_kernel(x_ref, w1t_ref, b1_ref, w2_ref, b2_ref, o_ref):
    # x_ref: (tm, E)   w1t_ref: (E, 4E)   b1_ref: (1, 4E)
    #                  w2_ref:  (E, 4E)   b2_ref: (1, E)    o_ref: (tm, E)
    x = x_ref[...]

    # ---- fc1: x @ W1.T  ==  x @ W1t  (canonical (M,K)x(K,N), lane-dense RHS) ----
    h = jax.lax.dot_general(
        x, w1t_ref[...],
        dimension_numbers=(((1,), (0,)), ((), ())),
        preferred_element_type=jnp.float32)                 # (tm, 4E)
    h = h + b1_ref[...]                                     # (1, 4E) broadcast

    # ---- GELU (exact, f32 elementwise) ----
    h = _gelu_exact(h)

    # ---- fc2: h @ W2.T (W2 kept lane-dense (E, 4E); contract last axes) ----
    y = jax.lax.dot_general(
        h, w2_ref[...],
        dimension_numbers=(((1,), (1,)), ((), ())),
        preferred_element_type=jnp.float32)                 # (tm, E)
    y = y + b2_ref[...]

    # TODO(synk): nn.Dropout omitted (identity in eval mode). For train-time
    # parity add pltpu.prng_seed + pltpu.prng_random_bits masking + 1/(1-p) scale.
    o_ref[...] = y.astype(o_ref.dtype)


def mlp_block(x, w1, b1, w2, b2):
    """MLPBlock forward.

    x:  (B, S, E) f32
    w1: (4E, E)   b1: (4E,)   -- PyTorch nn.Linear (out_features, in_features)
    w2: (E, 4E)   b2: (E,)
    returns (B, S, E) f32
    """
    B, S, E = x.shape
    Hd = w1.shape[0]
    M = B * S

    # Layout plumbing only (wrapper-side): lane-dense 2-D slabs + pre-transposed W1.
    x2 = x.reshape(M, E)
    w1t = w1.T                           # (E, 4E) -- lane-dense, canonical fc1 RHS
    b1_2 = b1.reshape(1, Hd)
    b2_2 = b2.reshape(1, E)

    # Row-tile size: whole problem in one step at small M; tiled + "parallel"
    # (v7x 2-TC sharding) once M grows.
    tm = M if M <= 512 else 512
    num_m = pl.cdiv(M, tm)

    cost = pl.CostEstimate(
        flops=4 * M * E * Hd,                       # two matmuls, 2*M*E*Hd each
        transcendentals=2 * M * Hd,                 # exp + reciprocal per hidden elem
        bytes_accessed=4 * (x2.size + w1t.size + b1_2.size + w2.size + b2_2.size
                            + M * E),
    )

    out2 = pl.pallas_call(
        _mlp_block_kernel,
        out_shape=jax.ShapeDtypeStruct((M, E), x.dtype),
        grid=(num_m,),
        in_specs=[
            pl.BlockSpec((tm, E), lambda i: (i, 0)),    # x rows
            pl.BlockSpec((E, Hd), lambda i: (0, 0)),    # W1.T (resident)
            pl.BlockSpec((1, Hd), lambda i: (0, 0)),    # b1
            pl.BlockSpec((E, Hd), lambda i: (0, 0)),    # W2  (resident)
            pl.BlockSpec((1, E), lambda i: (0, 0)),     # b2
        ],
        out_specs=pl.BlockSpec((tm, E), lambda i: (i, 0)),
        compiler_params=pltpu.CompilerParams(
            dimension_semantics=("parallel",)),
        cost_estimate=cost,
    )(x2, w1t, b1_2, w2, b2_2)

    return out2.reshape(B, S, E)


def _reference(x, w1, b1, w2, b2):
    h = jax.nn.gelu(x @ w1.T + b1, approximate=False)
    return h @ w2.T + b2


if __name__ == "__main__":
    # Small shapes consistent with the module:
    #   batch=2, block_size(seq)=8, embeddings_dims=32 -> hidden = 4*32 = 128
    B, S, E = 2, 8, 32
    Hd = 4 * E

    key = jax.random.PRNGKey(0)
    kx, kw1, kb1, kw2, kb2 = jax.random.split(key, 5)
    x = jax.random.normal(kx, (B, S, E), dtype=jnp.float32)
    # deterministic nn.Linear-style params, (out_features, in_features) layout
    w1 = jax.random.normal(kw1, (Hd, E), dtype=jnp.float32) * (E ** -0.5)
    b1 = jax.random.normal(kb1, (Hd,), dtype=jnp.float32) * 0.1
    w2 = jax.random.normal(kw2, (E, Hd), dtype=jnp.float32) * (Hd ** -0.5)
    b2 = jax.random.normal(kb2, (E,), dtype=jnp.float32) * 0.1

    out = mlp_block(x, w1, b1, w2, b2)
    out = jax.block_until_ready(out)

    ref = _reference(x, w1, b1, w2, b2)
    assert out.shape == (B, S, E)
    assert jnp.allclose(out, ref, atol=1e-4, rtol=1e-4), "mismatch vs reference"

    print("KERNEL_OK")
</pallas_src>

<mosaic_0001>
module attributes {stable_mosaic.version = 11 : i64} {
  func.func @_mlp_block_kernel(%arg0: i32, %arg1: memref<16x32xf32, #tpu.memory_space<vmem>>, %arg2: memref<32x128xf32, #tpu.memory_space<vmem>>, %arg3: memref<1x128xf32, #tpu.memory_space<vmem>>, %arg4: memref<32x128xf32, #tpu.memory_space<vmem>>, %arg5: memref<1x32xf32, #tpu.memory_space<vmem>>, %arg6: memref<16x32xf32, #tpu.memory_space<vmem>>) attributes {dimension_semantics = [#tpu.dimension_semantics<parallel>], iteration_bounds = array<i64: 1>, scalar_prefetch = 0 : i64, scratch_operands = 0 : i64, tpu.core_type = #tpu.core_type<tc>, window_params = [{transform_indices = @transform_0, window_bounds = array<i64: 16, 32>}, {pipeline_mode = #tpu.pipeline_mode<synchronous>, transform_indices = @transform_1, window_bounds = array<i64: 32, 128>}, {pipeline_mode = #tpu.pipeline_mode<synchronous>, transform_indices = @transform_2, window_bounds = array<i64: 1, 128>}, {pipeline_mode = #tpu.pipeline_mode<synchronous>, transform_indices = @transform_3, window_bounds = array<i64: 32, 128>}, {pipeline_mode = #tpu.pipeline_mode<synchronous>, transform_indices = @transform_4, window_bounds = array<i64: 1, 32>}, {transform_indices = @transform_5, window_bounds = array<i64: 16, 32>}]} {
    %c0 = arith.constant 0 : index
    %c0_0 = arith.constant 0 : index
    %0 = vector.load %arg1[%c0, %c0_0] : memref<16x32xf32, #tpu.memory_space<vmem>>, vector<16x32xf32>
    %c0_1 = arith.constant 0 : index
    %c0_2 = arith.constant 0 : index
    %1 = vector.load %arg2[%c0_1, %c0_2] : memref<32x128xf32, #tpu.memory_space<vmem>>, vector<32x128xf32>
    %cst = arith.constant dense<0.000000e+00> : vector<16x128xf32>
    %2 = tpu.matmul %0, %1, %cst {dimension_numbers = #tpu.dot_dimension_numbers<[1], [0], [0], [1], [0, 0, 1, 1], [], []>} : vector<16x32xf32>, vector<32x128xf32>, vector<16x128xf32> -> vector<16x128xf32>
    %c0_3 = arith.constant 0 : index
    %c0_4 = arith.constant 0 : index
    %3 = vector.load %arg3[%c0_3, %c0_4] : memref<1x128xf32, #tpu.memory_space<vmem>>, vector<1x128xf32>
    %4 = vector.broadcast %3 : vector<1x128xf32> to vector<16x128xf32>
    %5 = arith.addf %2, %4 : vector<16x128xf32>
    %cst_5 = arith.constant 5.000000e-01 : f32
    %6 = vector.broadcast %cst_5 : f32 to vector<16x128xf32>
    %7 = arith.mulf %6, %5 : vector<16x128xf32>
    %cst_6 = arith.constant 0.707106769 : f32
    %8 = vector.broadcast %cst_6 : f32 to vector<16x128xf32>
    %9 = arith.mulf %5, %8 : vector<16x128xf32>
    %10 = math.absf %9 : vector<16x128xf32>
    %cst_7 = arith.constant 0.327591091 : f32
    %11 = vector.broadcast %cst_7 : f32 to vector<16x128xf32>
    %12 = arith.mulf %11, %10 : vector<16x128xf32>
    %cst_8 = arith.constant 1.000000e+00 : f32
    %13 = vector.broadcast %cst_8 : f32 to vector<16x128xf32>
    %14 = arith.addf %13, %12 : vector<16x128xf32>
    %15 = tpu.reciprocal %14 {approx = true} : vector<16x128xf32> -> vector<16x128xf32>
    %16 = arith.mulf %14, %15 : vector<16x128xf32>
    %cst_9 = arith.constant 2.000000e+00 : f32
    %17 = vector.broadcast %cst_9 : f32 to vector<16x128xf32>
    %18 = arith.subf %17, %16 : vector<16x128xf32>
    %19 = arith.mulf %15, %18 : vector<16x128xf32>
    %cst_10 = arith.constant 1.06140542 : f32
    %20 = vector.broadcast %cst_10 : f32 to vector<16x128xf32>
    %21 = arith.mulf %20, %19 : vector<16x128xf32>
    %cst_11 = arith.constant -1.45315206 : f32
    %22 = vector.broadcast %cst_11 : f32 to vector<16x128xf32>
    %23 = arith.addf %21, %22 : vector<16x128xf32>
    %24 = arith.mulf %23, %19 : vector<16x128xf32>
    %cst_12 = arith.constant 1.42141378 : f32
    %25 = vector.broadcast %cst_12 : f32 to vector<16x128xf32>
    %26 = arith.addf %24, %25 : vector<16x128xf32>
    %27 = arith.mulf %26, %19 : vector<16x128xf32>
    %cst_13 = arith.constant -0.284496725 : f32
    %28 = vector.broadcast %cst_13 : f32 to vector<16x128xf32>
    %29 = arith.addf %27, %28 : vector<16x128xf32>
    %30 = arith.mulf %29, %19 : vector<16x128xf32>
    %cst_14 = arith.constant 0.254829586 : f32
    %31 = vector.broadcast %cst_14 : f32 to vector<16x128xf32>
    %32 = arith.addf %30, %31 : vector<16x128xf32>
    %33 = arith.mulf %32, %19 : vector<16x128xf32>
    %cst_15 = arith.constant 0.000000e+00 : f32
    %34 = vector.broadcast %cst_15 : f32 to vector<16x128xf32>
    %35 = arith.subf %34, %10 : vector<16x128xf32>
    %36 = arith.mulf %35, %10 : vector<16x128xf32>
    %37 = math.exp %36 : vector<16x128xf32>
    %38 = arith.mulf %33, %37 : vector<16x128xf32>
    %cst_16 = arith.constant 1.000000e+00 : f32
    %39 = vector.broadcast %cst_16 : f32 to vector<16x128xf32>
    %40 = arith.subf %39, %38 : vector<16x128xf32>
    %cst_17 = arith.constant 0.000000e+00 : f32
    %41 = vector.broadcast %cst_17 : f32 to vector<16x128xf32>
    %42 = arith.cmpf olt, %9, %41 : vector<16x128xf32>
    %cst_18 = arith.constant 0.000000e+00 : f32
    %43 = vector.broadcast %cst_18 : f32 to vector<16x128xf32>
    %44 = arith.subf %43, %40 : vector<16x128xf32>
    %45 = arith.select %42, %44, %40 : vector<16x128xi1>, vector<16x128xf32>
    %cst_19 = arith.constant 1.000000e+00 : f32
    %46 = vector.broadcast %cst_19 : f32 to vector<16x128xf32>
    %47 = arith.addf %46, %45 : vector<16x128xf32>
    %48 = arith.mulf %7, %47 : vector<16x128xf32>
    %c0_20 = arith.constant 0 : index
    %c0_21 = arith.constant 0 : index
    %49 = vector.load %arg4[%c0_20, %c0_21] : memref<32x128xf32, #tpu.memory_space<vmem>>, vector<32x128xf32>
    %cst_22 = arith.constant dense<0.000000e+00> : vector<16x32xf32>
    %50 = tpu.matmul %48, %49, %cst_22 {dimension_numbers = #tpu.dot_dimension_numbers<[1], [1], [0], [0], [0, 0, 1, 0], [], []>} : vector<16x128xf32>, vector<32x128xf32>, vector<16x32xf32> -> vector<16x32xf32>
    %c0_23 = arith.constant 0 : index
    %c0_24 = arith.constant 0 : index
    %51 = vector.load %arg5[%c0_23, %c0_24] : memref<1x32xf32, #tpu.memory_space<vmem>>, vector<1x32xf32>
    %52 = vector.broadcast %51 : vector<1x32xf32> to vector<16x32xf32>
    %53 = arith.addf %50, %52 : vector<16x32xf32>
    %c0_25 = arith.constant 0 : index
    %c0_26 = arith.constant 0 : index
    %54 = vector.load %arg6[%c0_25, %c0_26] : memref<16x32xf32, #tpu.memory_space<vmem>>, vector<16x32xf32>
    tpu.vector_store %arg6[%c0_25, %c0_26], %53 {strides = array<i32>} : memref<16x32xf32, #tpu.memory_space<vmem>>, vector<16x32xf32>,
    return
  }
  func.func @transform_0(%arg0: i32) -> (i32, i32) {
    %c0_i32 = arith.constant 0 : i32
    %c0_i32_0 = arith.constant 0 : i32
    return %arg0, %c0_i32 : i32, i32
  }
  func.func @transform_1(%arg0: i32) -> (i32, i32) {
    %c0_i32 = arith.constant 0 : i32
    %c0_i32_0 = arith.constant 0 : i32
    %c0_i32_1 = arith.constant 0 : i32
    return %c0_i32, %c0_i32_0 : i32, i32
  }
  func.func @transform_2(%arg0: i32) -> (i32, i32) {
    %c0_i32 = arith.constant 0 : i32
    %c0_i32_0 = arith.constant 0 : i32
    %c0_i32_1 = arith.constant 0 : i32
    return %c0_i32, %c0_i32_0 : i32, i32
  }
  func.func @transform_3(%arg0: i32) -> (i32, i32) {
    %c0_i32 = arith.constant 0 : i32
    %c0_i32_0 = arith.constant 0 : i32
    %c0_i32_1 = arith.constant 0 : i32
    return %c0_i32, %c0_i32_0 : i32, i32
  }
  func.func @transform_4(%arg0: i32) -> (i32, i32) {
    %c0_i32 = arith.constant 0 : i32
    %c0_i32_0 = arith.constant 0 : i32
    %c0_i32_1 = arith.constant 0 : i32
    return %c0_i32, %c0_i32_0 : i32, i32
  }
  func.func @transform_5(%arg0: i32) -> (i32, i32) {
    %c0_i32 = arith.constant 0 : i32
    %c0_i32_0 = arith.constant 0 : i32
    return %arg0, %c0_i32 : i32, i32
  }
}

</mosaic_0001>

<llo_original>
// kernel: tpu_custom_call.1
$region0: #{tpu_custom_call.1}
  #allocation0 [shape = 'u32[]', space=smem, size = 0x4, offset = 0x4, fixed_abs, tag = 'smem constant byte address 0x4 - core index']
  #allocation1 [shape = 'u32[72,128]{1,0:T(1,128)}', space=vmem, size = 0x9000, scoped, tag = 'internal scratch']
  %s0 = inlined_call_operand.hbm [shape: f32[16,32], index: 0, kind: input, shape index: {}]
  %s1 = inlined_call_operand.hbm [shape: f32[32,128], index: 1, kind: input, shape index: {}]
  %s2 = inlined_call_operand.vmem [shape: f32[1,128], index: 2, kind: input, shape index: {}]
  %s3 = inlined_call_operand.hbm [shape: f32[32,128], index: 3, kind: input, shape index: {}]
  %s4 = inlined_call_operand.vmem [shape: f32[1,32], index: 4, kind: input, shape index: {}]
  %s5 = inlined_call_operand.hbm [shape: f32[16,32], index: 5, kind: output, shape index: {}]
  %s6 = sld [smem:[#allocation0]]
  $region42: #{tpu_custom_call.1} parent=0
    _
  %s8 = ssub.s32 1, %s6
  %s9 = scalar_select 0, %s8, %s6
  $region1: #{tpu_custom_call.1} parent=0
    #allocation2 [shape = 'u8[8192]{0}', space=vmem, size = 0x2000, scoped, tag = 'input window, operand 0, single buffered']
    #allocation3 [shape = 's32[1]{0}', space=sflag, size = 0x4, scoped, tag = 'scoped memory for tpu_custom_call.1']
    #allocation4 [shape = 's32[1]{0}', space=sflag, size = 0x4, scoped, tag = 'scoped memory for tpu_custom_call.1']
    #allocation5 [shape = 'u8[16384]{0}', space=vmem, size = 0x4000, scoped, tag = 'input window, operand 1, single buffered']
    #allocation6 [shape = 's32[1]{0}', space=sflag, size = 0x4, scoped, tag = 'scoped memory for tpu_custom_call.1']
    #allocation7 [shape = 'u8[16384]{0}', space=vmem, size = 0x4000, scoped, tag = 'input window, operand 3, single buffered']
    #allocation8 [shape = 'u8[8192]{0}', space=vmem, size = 0x2000, scoped, tag = 'output window, operand 0, single buffered']
    %10 = vsyncpa [#allocation3], 0
    %11 = vsyncpa [#allocation6], 0
    %12 = vsyncpa [#allocation4], 0
    // Predicated region
    $region2: #{tpu_custom_call.1} parent=1 // pred_check
      _
    $region3: #{tpu_custom_call.1} parent=1 // pred_check_branch
      %14 = sbr.rel (0) target = $region5
    $region4: #{tpu_custom_call.1} parent=1 // pred_region
      %16 = vsyncadd [#allocation3], 0
      %s17 = sshll.u32 %s0, 4
      %s18 = int_to_ptr.hbm [resolvable:$true] %s17
      %s19 = sshll.u32 [#allocation2], 4
      %s20 = int_to_ptr.vmem [resolvable:$true] %s19
      %25 = dma.hbm_to_vmem [thread:$0]  %s18, 256, %s20, [#allocation3], 128, 128, 8
    $region5: #{tpu_custom_call.1} parent=1 // pred_fallthru
      _
    // Predicated region
    $region6: #{tpu_custom_call.1} parent=1 // pred_check
      _
    $region7: #{tpu_custom_call.1} parent=1 // pred_check_branch
      %27 = sbr.rel (0) target = $region9
    $region8: #{tpu_custom_call.1} parent=1 // pred_region
      %29 = vsyncadd [#allocation6], 0
      %s30 = sshll.u32 %s1, 4
      %s31 = int_to_ptr.hbm [resolvable:$true] %s30
      %s32 = sshll.u32 [#allocation5], 4
      %s33 = int_to_ptr.vmem [resolvable:$true] %s32
      %38 = dma.hbm_to_vmem [thread:$0]  %s31, 512, %s33, [#allocation6], 128, 128, 8
    $region9: #{tpu_custom_call.1} parent=1 // pred_fallthru
      _
    // Predicated region
    $region10: #{tpu_custom_call.1} parent=1 // pred_check
      _
    $region11: #{tpu_custom_call.1} parent=1 // pred_check_branch
      %40 = sbr.rel (0) target = $region13
    $region12: #{tpu_custom_call.1} parent=1 // pred_region
      _
    $region13: #{tpu_custom_call.1} parent=1 // pred_fallthru
      _
    // Predicated region
    $region14: #{tpu_custom_call.1} parent=1 // pred_check
      _
    $region15: #{tpu_custom_call.1} parent=1 // pred_check_branch
      %42 = sbr.rel (0) target = $region17
    $region16: #{tpu_custom_call.1} parent=1 // pred_region
      %44 = vsyncadd [#allocation6], 0
      %s45 = sshll.u32 %s3, 4
      %s46 = int_to_ptr.hbm [resolvable:$true] %s45
      %s47 = sshll.u32 [#allocation7], 4
      %s48 = int_to_ptr.vmem [resolvable:$true] %s47
      %53 = dma.hbm_to_vmem [thread:$0]  %s46, 512, %s48, [#allocation6], 128, 128, 8
    $region17: #{tpu_custom_call.1} parent=1 // pred_fallthru
      _
    // Predicated region
    $region18: #{tpu_custom_call.1} parent=1 // pred_check
      _
    $region19: #{tpu_custom_call.1} parent=1 // pred_check_branch
      %55 = sbr.rel (0) target = $region21
    $region20: #{tpu_custom_call.1} parent=1 // pred_region
      _
    $region21: #{tpu_custom_call.1} parent=1 // pred_fallthru
      _
    // Predicated region
    $region22: #{tpu_custom_call.1} parent=1 // pred_check
      _
    $region23: #{tpu_custom_call.1} parent=1 // pred_check_branch
      %57 = sbr.rel (0) target = $region25
    $region24: #{tpu_custom_call.1} parent=1 // pred_region
      %59 = dma.done [#allocation3], 256
    $region25: #{tpu_custom_call.1} parent=1 // pred_fallthru
      _
    // Predicated region
    $region26: #{tpu_custom_call.1} parent=1 // pred_check
      _
    $region27: #{tpu_custom_call.1} parent=1 // pred_check_branch
      %61 = sbr.rel (0) target = $region29
    $region28: #{tpu_custom_call.1} parent=1 // pred_region
      %63 = dma.done [#allocation6], 512
    $region29: #{tpu_custom_call.1} parent=1 // pred_fallthru
      _
    // Predicated region
    $region30: #{tpu_custom_call.1} parent=1 // pred_check
      _
    $region31: #{tpu_custom_call.1} parent=1 // pred_check_branch
      %65 = sbr.rel (0) target = $region33
    $region32: #{tpu_custom_call.1} parent=1 // pred_region
      %67 = dma.done [#allocation6], 512
    $region33: #{tpu_custom_call.1} parent=1 // pred_fallthru
      _
    %v68 = vld [vmem:[#allocation2] sm:$0xff]
    %v69 = vld [vmem:[#allocation2 + $0x8] sm:$0xff]
    %v70 = vld [vmem:[#allocation5] sm:$0xff]
    %v71 = vld [vmem:[#allocation5 + $0x8] sm:$0xff]
    %v72 = vld [vmem:[#allocation5 + $0x10] sm:$0xff]
    %v73 = vld [vmem:[#allocation5 + $0x18] sm:$0xff]
    %v74 = vld [vmem:[%s2] sm:$0x1]
    %v76 = vperm.slane %v74, 0
    %vm78 = vcmask 261120
    %v80 = vsel %vm78, %v68, 0
    %v83 = vsel %vm78, %v69, 0
    %85 = vmatpush.msra.mxu0 0.0
    %86 = vmatpush.msra.mxu0 0.0
    %87 = vmatpush.msra.mxu0 0.0
    %88 = vmatpush.msra.mxu0 0.0
    %89 = vmatpush.msra.mxu0 0.0
    %90 = vmatpush.msra.mxu0 0.0
    %91 = vmatpush.msra.mxu0 0.0
    %92 = vmatpush.msra.mxu0 0.0
    %93 = vmatpush.msra.mxu0 0.0
    %94 = vmatpush.msra.mxu0 0.0
    %95 = vmatpush.msra.mxu0 0.0
    %96 = vmatpush.msra.mxu0 0.0
    %97 = vmatpush.msra.mxu0 %v73
    %98 = vmatpush.msra.mxu0 %v72
    %99 = vmatpush.msra.mxu0 %v71
    %100 = vmatpush.msra.mxu0 %v70
    %101 = vmatmul.f32.gmra.mxu0 %v80
    %v102 = vpop.f32.mrf.mxu0
    %v103 = vadd.f32 %v76, %v102
    %104 = vmatmul.f32.gmra.mxu0 %v83
    %v105 = vpop.f32.mrf.mxu0
    %v106 = vadd.f32 %v76, %v105
    %107 = vdwg.mxu0
    %v108 = vmul.f32 %v103, 0.5
    %v109 = vmul.f32 %v106, 0.5
    %v110 = vmul.f32 %v103, 0.70710677
    %v111 = vmul.f32 %v106, 0.70710677
    %v112 = vand.u32 2147483647, %v110
    %v113 = vand.u32 2147483647, %v111
    %v114 = vmul.f32 %v112, 0.3275911
    %v115 = vmul.f32 %v113, 0.3275911
    %v116 = vadd.f32 %v114, 1.0
    %v117 = vadd.f32 %v115, 1.0
    %v118 = vrcp.pop %v116
    %v119 = vrcp.pop %v117
    %v120 = vmul.f32 %v116, %v118
    %v121 = vmul.f32 %v117, %v119
    %v122 = vsub.f32 2.0, %v120
    %v123 = vsub.f32 2.0, %v121
    %v124 = vmul.f32 %v118, %v122
    %v125 = vmul.f32 %v119, %v123
    %v126 = vmul.f32 %v124, 1.0614054
    %v127 = vmul.f32 %v125, 1.0614054
    %v128 = vadd.f32 %v126, -1.4531521
    %v129 = vadd.f32 %v127, -1.4531521
    %v130 = vmul.f32 %v128, %v124
    %v131 = vmul.f32 %v129, %v125
    %v132 = vadd.f32 %v130, 1.4214138
    %v133 = vadd.f32 %v131, 1.4214138
    %v134 = vmul.f32 %v132, %v124
    %v135 = vmul.f32 %v133, %v125
    %v136 = vadd.f32 %v134, -0.28449672
    %v137 = vadd.f32 %v135, -0.28449672
    %v138 = vmul.f32 %v136, %v124
    %v139 = vmul.f32 %v137, %v125
    %v140 = vadd.f32 %v138, 0.2548296
    %v141 = vadd.f32 %v139, 0.2548296
    %v142 = vmul.f32 %v140, %v124
    %v143 = vmul.f32 %v141, %v125
    %v144 = vsub.f32 0.0, %v112
    %v145 = vsub.f32 0.0, %v113
    %v146 = vmul.f32 %v144, %v112
    %v147 = vmul.f32 %v145, %v113
    %v148 = vmul.f32 %v146, 1.442695
    %v149 = vpow.pop %v148
    %v150 = vmul.f32 %v147, 1.442695
    %v151 = vpow.pop %v150
    %v152 = vmul.f32 %v142, %v149
    %v153 = vmul.f32 %v143, %v151
    %v154 = vsub.f32 1.0, %v152
    %v155 = vsub.f32 1.0, %v153
    %vm156 = vcmp.lt.f32.partialorder %v110, 0.0
    %vm157 = vcmp.lt.f32.partialorder %v111, 0.0
    %v158 = vsub.f32 0.0, %v154
    %v159 = vsub.f32 0.0, %v155
    %v160 = vsel %vm156, %v158, %v154
    %v161 = vsel %vm157, %v159, %v155
    %v162 = vadd.f32 %v160, 1.0
    %v163 = vadd.f32 %v161, 1.0
    %v164 = vmul.f32 %v108, %v162
    %v165 = vmul.f32 %v109, %v163
    %v166 = vld [vmem:[#allocation7] sm:$0xff]
    %v167 = vld [vmem:[#allocation7 + $0x8] sm:$0xff]
    %v168 = vld [vmem:[#allocation7 + $0x10] sm:$0xff]
    %v169 = vld [vmem:[#allocation7 + $0x18] sm:$0xff]
    %v170 = vld [vmem:[%s4] sm:$0x1]
    %v172 = vperm.slane %v170, 0
    %174 = vmatpush.xpose.msra.mxu0 0.0
    %175 = vmatpush.xpose.msra.mxu0 0.0
    %176 = vmatpush.xpose.msra.mxu0 0.0
    %177 = vmatpush.xpose.msra.mxu0 0.0
    %178 = vmatpush.xpose.msra.mxu0 0.0
    %179 = vmatpush.xpose.msra.mxu0 0.0
    %180 = vmatpush.xpose.msra.mxu0 0.0
    %181 = vmatpush.xpose.msra.mxu0 0.0
    %182 = vmatpush.xpose.msra.mxu0 0.0
    %183 = vmatpush.xpose.msra.mxu0 0.0
    %184 = vmatpush.xpose.msra.mxu0 0.0
    %185 = vmatpush.xpose.msra.mxu0 0.0
    %186 = vmatpush.xpose.msra.mxu0 %v169
    %187 = vmatpush.xpose.msra.mxu0 %v168
    %188 = vmatpush.xpose.msra.mxu0 %v167
    %189 = vmatpush.xpose.msra.mxu0 %v166
    %190 = vmatmul.f32.gmra.mxu0 %v164
    %v191 = vpop.f32.mrf.mxu0
    %v192 = vadd.f32 %v172, %v191
    %193 = vmatmul.f32.gmra.mxu0 %v165
    %v194 = vpop.f32.mrf.mxu0
    %v195 = vadd.f32 %v172, %v194
    %196 = vdwg.mxu0
    %197 = vst.msk [vmem:[#allocation8] sm:$0xff] %vm78, %v192
    %198 = vst.msk [vmem:[#allocation8 + $0x8] sm:$0xff] %vm78, %v195
    // Predicated region
    $region34: #{tpu_custom_call.1} parent=1 // pred_check
      _
    $region35: #{tpu_custom_call.1} parent=1 // pred_check_branch
      %200 = sbr.rel (0) target = $region37
    $region36: #{tpu_custom_call.1} parent=1 // pred_region
      %202 = vsyncadd [#allocation4], 0
      %s203 = sshll.u32 [#allocation8], 4
      %s204 = int_to_ptr.vmem [resolvable:$true] %s203
      %s205 = sshll.u32 %s5, 4
      %s206 = int_to_ptr.hbm [resolvable:$true] %s205
      %211 = dma.vmem_to_hbm [thread:$0]  %s204, 256, %s206, [#allocation4], 128, 128, 8
    $region37: #{tpu_custom_call.1} parent=1 // pred_fallthru
      _
    // Predicated region
    $region38: #{tpu_custom_call.1} parent=1 // pred_check
      _
    $region39: #{tpu_custom_call.1} parent=1 // pred_check_branch
      %213 = sbr.rel (0) target = $region41
    $region40: #{tpu_custom_call.1} parent=1 // pred_region
      %215 = dma.done [#allocation4], 256
    $region41: #{tpu_custom_call.1} parent=1 // pred_fallthru
      _
    %216 = vsyncpa [#allocation3], 1
    %217 = vsyncpa [#allocation6], 1
    %218 = vsyncpa [#allocation4], 1

</llo_original>
